<compile_context>
chip_gen: v6e
topology: v6e:2x2x1
jax: 0.10.0
libtpu: 0.0.40
codegen_flags: <defaults>
</compile_context>

<pallas_src>
import functools

import jax
import jax.numpy as jnp
from jax.experimental import pallas as pl
from jax.experimental.pallas import tpu as pltpu

LANES = 128            # lane width (fast axis)
SUBLANES = 8           # sublane alignment for the row axis
MAX_BLOCK_ROWS = 4096  # 4096 x 128 x f32 = 2 MiB per input block
VMEM_LIMIT_BYTES = 32 << 20   # safe on v5e/v6e (128 MiB phys) and v7x (64 MiB phys)
FLOPS_PER_ELEM = 20
TRANS_PER_ELEM = 3


def _num_tensorcores_per_chip():
    """Best-effort detection: v7x-class chips have 2 TensorCores per chip."""
    try:
        kind = jax.devices()[0].device_kind.lower()
    except Exception:
        return 1
    return 2 if "v7" in kind else 1


def _focal_elementwise(p, t, *, gamma, alpha, add_logist, bceonly, in_kernel):
    """Elementwise focal / BCE loss in f32, matching the PyTorch semantics."""
    p = p.astype(jnp.float32)
    t = t.astype(jnp.float32)
    if add_logist:
        # BCEWithLogitsLoss(reduction='none'): max(x,0) - x*t + log(1 + exp(-|x|))
        x = p
        e = jnp.exp(-jnp.abs(x))              # single EUP exp, reused below
        one_plus_e = 1.0 + e
        bce = jnp.maximum(x, 0.0) - x * t + jnp.log(one_plus_e)
        if bceonly:
            return bce
        # sigmoid(x) from the same exp; reciprocal instead of a VPU divide.
        num = jnp.where(x >= 0.0, 1.0, e)
        if in_kernel:
            p = num * pl.reciprocal(one_plus_e)   # approx=False: precision-safe
        else:
            p = num / one_plus_e
    else:
        # BCELoss(reduction='none') with PyTorch's log clamp at -100.
        log_p = jnp.maximum(jnp.log(p), -100.0)
        log_1p = jnp.maximum(jnp.log(1.0 - p), -100.0)
        bce = -(log_1p + t * (log_p - log_1p))    # == -(t*log_p + (1-t)*log_1p)
        if bceonly:
            return bce

    # _pt = 1 - (t*p + (1-t)*(1-p)) = t + p - 2tp   (clamped: protects sqrt path)
    _pt = jnp.maximum(t + p - 2.0 * (t * p), 0.0)
    # alpha_factor = t*a + (1-t)*(1-a) = (1-a) + t*(2a-1)  (constants folded)
    alpha_factor = (1.0 - alpha) + t * (2.0 * alpha - 1.0)
    if abs(gamma - 1.5) < 1e-12:
        mod = _pt * jnp.sqrt(_pt)                 # exact _pt ** 1.5, no generic pow
    elif abs(gamma - 2.0) < 1e-12:
        mod = _pt * _pt
    elif abs(gamma - 1.0) < 1e-12:
        mod = _pt
    elif gamma == 0.0:
        mod = jnp.ones_like(_pt)
    else:
        mod = _pt ** gamma
    return bce * alpha_factor * mod


def _focal_reduce_kernel(pred_ref, true_ref, out_ref, *, gamma, alpha,
                         add_logist, bceonly, step_axis):
    """out_ref is a small (8,128) per-core partial-sum tile, resident across the
    reduction grid axis."""
    step = pl.program_id(step_axis)

    @pl.when(step == 0)
    def _():
        out_ref[...] = jnp.zeros_like(out_ref)

    loss = _focal_elementwise(pred_ref[...], true_ref[...], gamma=gamma,
                              alpha=alpha, add_logist=add_logist,
                              bceonly=bceonly, in_kernel=True)
    br = loss.shape[0]
    # Tile-aligned (free) reshape + pure-VPU adds: (br,128) -> (8,128).
    out_ref[...] += loss.reshape(br // SUBLANES, SUBLANES, LANES).sum(axis=0)


def _focal_map_kernel(pred_ref, true_ref, out_ref, *, gamma, alpha,
                      add_logist, bceonly):
    loss = _focal_elementwise(pred_ref[...], true_ref[...], gamma=gamma,
                              alpha=alpha, add_logist=add_logist,
                              bceonly=bceonly, in_kernel=True)
    out_ref[...] = loss.astype(out_ref.dtype)


def focal_loss(pred, true, *, gamma=1.5, alpha=0.25, add_logist=False,
               bceonly=False, reduction='mean', max_block_rows=MAX_BLOCK_ROWS,
               num_partials=None):
    """JAX/Pallas equivalent of FocalLoss.forward -> (loss, None, None)."""
    orig_shape = pred.shape
    out_dtype = pred.dtype
    total = int(pred.size)

    # bceonly short-circuits with loss.mean() in the reference module.
    reduction_eff = 'mean' if bceonly else reduction
    is_reduce = reduction_eff in ('mean', 'sum')

    elem_kwargs = dict(gamma=gamma, alpha=alpha, add_logist=add_logist,
                       bceonly=bceonly)

    flat_pred = pred.reshape(-1)
    flat_true = true.reshape(-1)

    rows = total // LANES
    use_kernel = (total % LANES == 0) and rows >= SUBLANES

    if not use_kernel:
        # Tiny or lane-unaligned input: one fused pure-JAX pass (no copies).
        loss_all = _focal_elementwise(flat_pred, flat_true, in_kernel=False,
                                      **elem_kwargs)
        if is_reduce:
            s = jnp.sum(loss_all, dtype=jnp.float32)
            loss = s / total if reduction_eff == 'mean' else s
        else:
            loss = loss_all.astype(out_dtype).reshape(orig_shape)
        return (loss, None, None)

    # Free bitcast views (no HBM traffic).
    pred2 = flat_pred.reshape(rows, LANES)
    true2 = flat_true.reshape(rows, LANES)
    block_rows = min(max_block_rows, (rows // SUBLANES) * SUBLANES)
    in_itemsize = pred2.dtype.itemsize + true2.dtype.itemsize

    if is_reduce:
        # Only FULL blocks go through the kernel (no OOB reads, no masking).
        num_blocks = rows // block_rows
        if num_partials is None:
            num_partials = _num_tensorcores_per_chip()
        if num_blocks < 2 * num_partials:
            num_partials = 1
        num_blocks -= num_blocks % num_partials
        main_rows = num_blocks * block_rows
        main_elems = main_rows * LANES

        step_axis = 1 if num_partials > 1 else 0
        kernel = functools.partial(_focal_reduce_kernel, step_axis=step_axis,
                                   **elem_kwargs)

        if num_partials > 1:
            bpc = num_blocks // num_partials
            grid = (num_partials, bpc)
            in_map = lambda c, i: (c * bpc + i, 0)
            out_map = lambda c, i: (c, 0)
            dim_sem = (pltpu.CORE_PARALLEL, pltpu.ARBITRARY)
        else:
            grid = (num_blocks,)
            in_map = lambda i: (i, 0)
            out_map = lambda i: (0, 0)
            dim_sem = ("arbitrary",)

        out_bytes = num_partials * SUBLANES * LANES * 4
        partial_tiles = pl.pallas_call(
            kernel,
            out_shape=jax.ShapeDtypeStruct((num_partials * SUBLANES, LANES),
                                           jnp.float32),
            grid_spec=pltpu.PrefetchScalarGridSpec(
                num_scalar_prefetch=0,
                grid=grid,
                in_specs=[pl.BlockSpec((block_rows, LANES), in_map),
                          pl.BlockSpec((block_rows, LANES), in_map)],
                out_specs=pl.BlockSpec((SUBLANES, LANES), out_map)),
            compiler_params=pltpu.CompilerParams(
                dimension_semantics=dim_sem,
                vmem_limit_bytes=VMEM_LIMIT_BYTES),
            cost_estimate=pl.CostEstimate(
                flops=int(FLOPS_PER_ELEM * main_elems),
                transcendentals=int(TRANS_PER_ELEM * main_elems),
                bytes_accessed=int(main_elems * in_itemsize + out_bytes)),
        )(pred2, true2)

        total_sum = jnp.sum(partial_tiles, dtype=jnp.float32)
        if main_elems < total:
            # Leftover rows + lane tail: tiny fused pure-JAX epilogue.
            tail = _focal_elementwise(flat_pred[main_elems:],
                                      flat_true[main_elems:],
                                      in_kernel=False, **elem_kwargs)
            total_sum = total_sum + jnp.sum(tail, dtype=jnp.float32)
        loss = total_sum / total if reduction_eff == 'mean' else total_sum
    else:  # reduction == 'none'
        num_blocks = pl.cdiv(rows, block_rows)   # last block may be partial
        kernel = functools.partial(_focal_map_kernel, **elem_kwargs)
        out2 = pl.pallas_call(
            kernel,
            out_shape=jax.ShapeDtypeStruct((rows, LANES), out_dtype),
            grid_spec=pltpu.PrefetchScalarGridSpec(
                num_scalar_prefetch=0,
                grid=(num_blocks,),
                in_specs=[pl.BlockSpec((block_rows, LANES), lambda i: (i, 0)),
                          pl.BlockSpec((block_rows, LANES), lambda i: (i, 0))],
                out_specs=pl.BlockSpec((block_rows, LANES), lambda i: (i, 0))),
            compiler_params=pltpu.CompilerParams(
                dimension_semantics=("parallel",),
                vmem_limit_bytes=VMEM_LIMIT_BYTES),
            cost_estimate=pl.CostEstimate(
                flops=int(FLOPS_PER_ELEM * total),
                transcendentals=int(TRANS_PER_ELEM * total),
                bytes_accessed=int(total * (in_itemsize + out_dtype.itemsize))),
        )(pred2, true2)
        loss = out2.reshape(orig_shape)

    return (loss, None, None)


def _focal_loss_ref(pred, true, *, gamma=1.5, alpha=0.25, add_logist=False,
                    bceonly=False, reduction='mean'):
    """Pure-JAX reference mirroring the PyTorch forward."""
    pred = pred.astype(jnp.float32)
    true = true.astype(jnp.float32)
    if add_logist:
        x = pred
        bce = jnp.maximum(x, 0.0) - x * true + jnp.log1p(jnp.exp(-jnp.abs(x)))
        pred = jax.nn.sigmoid(x)
    else:
        bce = -(true * jnp.maximum(jnp.log(pred), -100.0)
                + (1.0 - true) * jnp.maximum(jnp.log(1.0 - pred), -100.0))
    if bceonly:
        return bce.mean()
    p_t = true * pred + (1.0 - true) * (1.0 - pred)
    _pt = 1.0 - p_t
    alpha_factor = true * alpha + (1.0 - true) * (1.0 - alpha)
    loss = bce * alpha_factor * (_pt ** gamma)
    if reduction == 'mean':
        return loss.mean()
    elif reduction == 'sum':
        return loss.sum()
    return loss


if __name__ == "__main__":
    key = jax.random.PRNGKey(0)
    k_pred, k_true = jax.random.split(key)

    shape = (2, 4, 16, 16)  # NCHW, as the PyTorch module would see it
    logits = jax.random.normal(k_pred, shape, dtype=jnp.float32)
    probs = jax.nn.sigmoid(logits)          # BCELoss path expects probabilities
    true = (jax.random.uniform(k_true, shape) > 0.5).astype(jnp.float32)

    # 1) Default config: BCELoss path, gamma=1.5, alpha=0.25, reduction='mean'.
    loss, a, b = focal_loss(probs, true)
    loss = jax.block_until_ready(loss)
    ref = _focal_loss_ref(probs, true)
    assert a is None and b is None
    assert jnp.allclose(loss, ref, rtol=2e-5, atol=1e-5), (loss, ref)

    # 2) Logits path, sum reduction.
    loss, _, _ = focal_loss(logits, true, add_logist=True, reduction='sum')
    ref = _focal_loss_ref(logits, true, add_logist=True, reduction='sum')
    assert jnp.allclose(loss, ref, rtol=2e-5, atol=1e-4), (loss, ref)

    # 3) 'none' reduction (elementwise output, input dtype preserved).
    loss, _, _ = focal_loss(probs, true, reduction='none')
    ref = _focal_loss_ref(probs, true, reduction='none')
    assert loss.shape == shape and loss.dtype == probs.dtype
    assert jnp.allclose(loss, ref, rtol=2e-5, atol=1e-6)

    # 4) bceonly short-circuit (returns BCE mean).
    loss, _, _ = focal_loss(logits, true, add_logist=True, bceonly=True)
    ref = _focal_loss_ref(logits, true, add_logist=True, bceonly=True)
    assert jnp.allclose(loss, ref, rtol=2e-5, atol=1e-5), (loss, ref)

    # 5) rows not divisible by block_rows: multi-step reduce grid + row-tail
    #    handled by the pure-JAX epilogue (no padding, no masking).
    shape2 = (2, 4, 20, 20)   # 3200 elements = 25 lane rows
    probs2 = jax.nn.sigmoid(jax.random.normal(k_pred, shape2, dtype=jnp.float32))
    true2 = (jax.random.uniform(k_true, shape2) > 0.5).astype(jnp.float32)
    loss, _, _ = focal_loss(probs2, true2, max_block_rows=8)
    ref = _focal_loss_ref(probs2, true2)
    loss = jax.block_until_ready(loss)
    assert jnp.allclose(loss, ref, rtol=2e-5, atol=1e-5), (loss, ref)

    # 6) 'none' with a partial last block (OOB writes dropped by Pallas).
    loss, _, _ = focal_loss(probs2, true2, reduction='none', max_block_rows=8)
    ref = _focal_loss_ref(probs2, true2, reduction='none')
    assert jnp.allclose(loss, ref, rtol=2e-5, atol=1e-6)

    # 7) Lane-unaligned total -> fused pure-JAX fallback path.
    shape3 = (1, 3, 13, 13)   # 507 elements, not a multiple of 128
    probs3 = jax.nn.sigmoid(jax.random.normal(k_pred, shape3, dtype=jnp.float32))
    true3 = (jax.random.uniform(k_true, shape3) > 0.5).astype(jnp.float32)
    loss, _, _ = focal_loss(probs3, true3)
    ref = _focal_loss_ref(probs3, true3)
    loss = jax.block_until_ready(loss)
    assert jnp.allclose(loss, ref, rtol=2e-5, atol=1e-5), (loss, ref)

    print("KERNEL_OK")
</pallas_src>

<mosaic_0001>
module attributes {stable_mosaic.version = 11 : i64} {
  func.func @_focal_reduce_kernel(%arg0: i32, %arg1: memref<16x128xf32, #tpu.memory_space<vmem>>, %arg2: memref<16x128xf32, #tpu.memory_space<vmem>>, %arg3: memref<8x128xf32, #tpu.memory_space<vmem>>) attributes {dimension_semantics = [#tpu.dimension_semantics<arbitrary>], iteration_bounds = array<i64: 1>, scalar_prefetch = 0 : i64, scratch_operands = 0 : i64, tpu.core_type = #tpu.core_type<tc>, window_params = [{transform_indices = @transform_0, window_bounds = array<i64: 16, 128>}, {transform_indices = @transform_1, window_bounds = array<i64: 16, 128>}, {pipeline_mode = #tpu.pipeline_mode<synchronous>, transform_indices = @transform_2, window_bounds = array<i64: 8, 128>}]} {
    %c0_i32 = arith.constant 0 : i32
    %0 = arith.cmpi eq, %arg0, %c0_i32 : i32
    %1 = arith.extui %0 : i1 to i32
    %c0_i32_0 = arith.constant 0 : i32
    %2 = arith.cmpi ne, %1, %c0_i32_0 : i32
    scf.if %2 {
      %cst_16 = arith.constant 0.000000e+00 : f32
      %38 = vector.broadcast %cst_16 : f32 to vector<8x128xf32>
      %c0_17 = arith.constant 0 : index
      %c0_18 = arith.constant 0 : index
      %39 = vector.load %arg3[%c0_17, %c0_18] : memref<8x128xf32, #tpu.memory_space<vmem>>, vector<8x128xf32>
      tpu.vector_store %arg3[%c0_17, %c0_18], %38 {strides = array<i32>} : memref<8x128xf32, #tpu.memory_space<vmem>>, vector<8x128xf32>,
    } else {
    }
    %c0 = arith.constant 0 : index
    %c0_1 = arith.constant 0 : index
    %3 = vector.load %arg1[%c0, %c0_1] : memref<16x128xf32, #tpu.memory_space<vmem>>, vector<16x128xf32>
    %c0_2 = arith.constant 0 : index
    %c0_3 = arith.constant 0 : index
    %4 = vector.load %arg2[%c0_2, %c0_3] : memref<16x128xf32, #tpu.memory_space<vmem>>, vector<16x128xf32>
    %5 = math.log %3 : vector<16x128xf32>
    %cst = arith.constant -1.000000e+02 : f32
    %6 = vector.broadcast %cst : f32 to vector<16x128xf32>
    %7 = arith.maximumf %5, %6 : vector<16x128xf32>
    %cst_4 = arith.constant 1.000000e+00 : f32
    %8 = vector.broadcast %cst_4 : f32 to vector<16x128xf32>
    %9 = arith.subf %8, %3 : vector<16x128xf32>
    %10 = math.log %9 : vector<16x128xf32>
    %cst_5 = arith.constant -1.000000e+02 : f32
    %11 = vector.broadcast %cst_5 : f32 to vector<16x128xf32>
    %12 = arith.maximumf %10, %11 : vector<16x128xf32>
    %13 = arith.subf %7, %12 : vector<16x128xf32>
    %14 = arith.mulf %4, %13 : vector<16x128xf32>
    %15 = arith.addf %12, %14 : vector<16x128xf32>
    %cst_6 = arith.constant 0.000000e+00 : f32
    %16 = vector.broadcast %cst_6 : f32 to vector<16x128xf32>
    %17 = arith.subf %16, %15 : vector<16x128xf32>
    %18 = arith.addf %4, %3 : vector<16x128xf32>
    %19 = arith.mulf %4, %3 : vector<16x128xf32>
    %cst_7 = arith.constant 2.000000e+00 : f32
    %20 = vector.broadcast %cst_7 : f32 to vector<16x128xf32>
    %21 = arith.mulf %20, %19 : vector<16x128xf32>
    %22 = arith.subf %18, %21 : vector<16x128xf32>
    %cst_8 = arith.constant 0.000000e+00 : f32
    %23 = vector.broadcast %cst_8 : f32 to vector<16x128xf32>
    %24 = arith.maximumf %22, %23 : vector<16x128xf32>
    %cst_9 = arith.constant -5.000000e-01 : f32
    %25 = vector.broadcast %cst_9 : f32 to vector<16x128xf32>
    %26 = arith.mulf %4, %25 : vector<16x128xf32>
    %cst_10 = arith.constant 7.500000e-01 : f32
    %27 = vector.broadcast %cst_10 : f32 to vector<16x128xf32>
    %28 = arith.addf %27, %26 : vector<16x128xf32>
    %29 = math.sqrt %24 : vector<16x128xf32>
    %30 = arith.mulf %24, %29 : vector<16x128xf32>
    %31 = arith.mulf %17, %28 : vector<16x128xf32>
    %32 = arith.mulf %31, %30 : vector<16x128xf32>
    %c0_11 = arith.constant 0 : index
    %c0_12 = arith.constant 0 : index
    %33 = vector.load %arg3[%c0_11, %c0_12] : memref<8x128xf32, #tpu.memory_space<vmem>>, vector<8x128xf32>
    %34 = vector.shape_cast %32 : vector<16x128xf32> to vector<2x8x128xf32>
    %cst_13 = arith.constant dense<0.000000e+00> : vector<8x128xf32>
    %35 = vector.multi_reduction <add>, %34, %cst_13 [0] : vector<2x8x128xf32> to vector<8x128xf32>
    %36 = arith.addf %33, %35 : vector<8x128xf32>
    %c0_14 = arith.constant 0 : index
    %c0_15 = arith.constant 0 : index
    %37 = vector.load %arg3[%c0_14, %c0_15] : memref<8x128xf32, #tpu.memory_space<vmem>>, vector<8x128xf32>
    tpu.vector_store %arg3[%c0_14, %c0_15], %36 {strides = array<i32>} : memref<8x128xf32, #tpu.memory_space<vmem>>, vector<8x128xf32>,
    return
  }
  func.func @transform_0(%arg0: i32) -> (i32, i32) {
    %c0_i32 = arith.constant 0 : i32
    %c0_i32_0 = arith.constant 0 : i32
    return %arg0, %c0_i32 : i32, i32
  }
  func.func @transform_1(%arg0: i32) -> (i32, i32) {
    %c0_i32 = arith.constant 0 : i32
    %c0_i32_0 = arith.constant 0 : i32
    return %arg0, %c0_i32 : i32, i32
  }
  func.func @transform_2(%arg0: i32) -> (i32, i32) {
    %c0_i32 = arith.constant 0 : i32
    %c0_i32_0 = arith.constant 0 : i32
    %c0_i32_1 = arith.constant 0 : i32
    return %c0_i32, %c0_i32_0 : i32, i32
  }
}

</mosaic_0001>

<llo_original>
// kernel: tpu_custom_call.1
$region0: #{tpu_custom_call.1}
  #allocation0 [shape = 'u32[]', space=smem, size = 0x4, offset = 0x4, fixed_abs, tag = 'smem constant byte address 0x4 - core index']
  #allocation1 [shape = 'u32[144,128]{1,0:T(1,128)}', space=vmem, size = 0x12000, scoped, tag = 'internal scratch']
  %s0 = inlined_call_operand.hbm [shape: f32[16,128], index: 0, kind: input, shape index: {}]
  %s1 = inlined_call_operand.hbm [shape: f32[16,128], index: 1, kind: input, shape index: {}]
  %s2 = inlined_call_operand.hbm [shape: f32[8,128], index: 2, kind: output, shape index: {}]
  %s3 = sld [smem:[#allocation0]]
  $region30: #{tpu_custom_call.1} parent=0
    _
  %s5 = ssub.s32 1, %s3
  %s6 = scalar_select 0, %s5, %s3
  $region1: #{tpu_custom_call.1} parent=0
    #allocation2 [shape = 'u8[8192]{0}', space=vmem, size = 0x2000, scoped, tag = 'input window, operand 0, single buffered']
    #allocation3 [shape = 's32[1]{0}', space=sflag, size = 0x4, scoped, tag = 'scoped memory for tpu_custom_call.1']
    #allocation4 [shape = 's32[1]{0}', space=sflag, size = 0x4, scoped, tag = 'scoped memory for tpu_custom_call.1']
    #allocation5 [shape = 'u8[8192]{0}', space=vmem, size = 0x2000, scoped, tag = 'input window, operand 1, single buffered']
    #allocation6 [shape = 's32[1]{0}', space=sflag, size = 0x4, scoped, tag = 'scoped memory for tpu_custom_call.1']
    #allocation7 [shape = 'u8[4096]{0}', space=vmem, size = 0x1000, scoped, tag = 'output window, operand 0, single buffered']
    %7 = vsyncpa [#allocation3], 0
    %8 = vsyncpa [#allocation6], 0
    %9 = vsyncpa [#allocation4], 0
    // Predicated region
    $region2: #{tpu_custom_call.1} parent=1 // pred_check
      _
    $region3: #{tpu_custom_call.1} parent=1 // pred_check_branch
      %11 = sbr.rel (0) target = $region5
    $region4: #{tpu_custom_call.1} parent=1 // pred_region
      %s13 = ssub.s32 256, 256
      %14 = vsyncadd [#allocation3], %s13
      %s15 = sshll.u32 [#allocation2], 4
      %s16 = int_to_ptr.vmem [resolvable:$true] %s15
      %21 = dma.hbm_to_vmem [thread:$0]  %s0, 256, %s16, [#allocation3], 128, 128, 8
    $region5: #{tpu_custom_call.1} parent=1 // pred_fallthru
      _
    // Predicated region
    $region6: #{tpu_custom_call.1} parent=1 // pred_check
      _
    $region7: #{tpu_custom_call.1} parent=1 // pred_check_branch
      %23 = sbr.rel (0) target = $region9
    $region8: #{tpu_custom_call.1} parent=1 // pred_region
      %s25 = ssub.s32 256, 256
      %26 = vsyncadd [#allocation6], %s25
      %s27 = sshll.u32 [#allocation5], 4
      %s28 = int_to_ptr.vmem [resolvable:$true] %s27
      %33 = dma.hbm_to_vmem [thread:$0]  %s1, 256, %s28, [#allocation6], 128, 128, 8
    $region9: #{tpu_custom_call.1} parent=1 // pred_fallthru
      _
    // Predicated region
    $region10: #{tpu_custom_call.1} parent=1 // pred_check
      _
    $region11: #{tpu_custom_call.1} parent=1 // pred_check_branch
      %35 = sbr.rel (0) target = $region13
    $region12: #{tpu_custom_call.1} parent=1 // pred_region
      %36 = dma.done [#allocation3], 256
    $region13: #{tpu_custom_call.1} parent=1 // pred_fallthru
      _
    // Predicated region
    $region14: #{tpu_custom_call.1} parent=1 // pred_check
      _
    $region15: #{tpu_custom_call.1} parent=1 // pred_check_branch
      %38 = sbr.rel (0) target = $region17
    $region16: #{tpu_custom_call.1} parent=1 // pred_region
      %39 = dma.done [#allocation6], 256
    $region17: #{tpu_custom_call.1} parent=1 // pred_fallthru
      _
    %p40 = scmp.eq.s32.totalorder 0, 0
    // Predicated region
    $region18: #{tpu_custom_call.1} parent=1 // pred_check
      %p41 = pneg %p40
    $region19: #{tpu_custom_call.1} parent=1 // pred_check_branch
      %43 = sbr.rel (%p41) target = $region21
    $region20: #{tpu_custom_call.1} parent=1 // pred_region
      %44 = vst [vmem:[#allocation7] sm:$0xff] 0.0
    $region21: #{tpu_custom_call.1} parent=1 // pred_fallthru
      _
    %v45 = vld [vmem:[#allocation2] sm:$0xff]
    %v46 = vld [vmem:[#allocation2 + $0x8] sm:$0xff]
    %v47 = vld [vmem:[#allocation5] sm:$0xff]
    %v48 = vld [vmem:[#allocation5 + $0x8] sm:$0xff]
    %v49 = vlog2.pop %v45
    %v50 = vmul.f32 %v49, 0.6931472
    %v51 = vlog2.pop %v46
    %v52 = vmul.f32 %v51, 0.6931472
    %v53 = vmax.f32 %v50, -100.0
    %v54 = vmax.f32 %v52, -100.0
    %v55 = vsub.f32 1.0, %v45
    %v56 = vsub.f32 1.0, %v46
    %v57 = vlog2.pop %v55
    %v58 = vmul.f32 %v57, 0.6931472
    %v59 = vlog2.pop %v56
    %v60 = vmul.f32 %v59, 0.6931472
    %v61 = vmax.f32 %v58, -100.0
    %v62 = vmax.f32 %v60, -100.0
    %v63 = vsub.f32 %v53, %v61
    %v64 = vsub.f32 %v54, %v62
    %v65 = vmul.f32 %v47, %v63
    %v66 = vmul.f32 %v48, %v64
    %v67 = vadd.f32 %v61, %v65
    %v68 = vadd.f32 %v62, %v66
    %v69 = vsub.f32 0.0, %v67
    %v70 = vsub.f32 0.0, %v68
    %v71 = vadd.f32 %v47, %v45
    %v72 = vadd.f32 %v48, %v46
    %v73 = vmul.f32 %v47, %v45
    %v74 = vmul.f32 %v48, %v46
    %v75 = vmul.f32 %v73, 2.0
    %v76 = vmul.f32 %v74, 2.0
    %v77 = vsub.f32 %v71, %v75
    %v78 = vsub.f32 %v72, %v76
    %v79 = vmax.f32 %v77, 0.0
    %v80 = vmax.f32 %v78, 0.0
    %v81 = vmul.f32 %v47, -0.5
    %v82 = vmul.f32 %v48, -0.5
    %v83 = vadd.f32 %v81, 0.75
    %v84 = vadd.f32 %v82, 0.75
    %v85 = vrsqrt.pop %v79
    %v86 = vmul.f32 %v79, %v85
    %vm87 = vcmp.eq.f32.partialorder %v79, inf
    %v88 = vsel %vm87, %v79, %v86
    %vm89 = vcmp.eq.f32.partialorder %v79, 0.0
    %v90 = vand.u32 %v79, 2147483648
    %v91 = vsel %vm89, %v90, %v88
    %v92 = vrsqrt.pop %v80
    %v93 = vmul.f32 %v80, %v92
    %vm94 = vcmp.eq.f32.partialorder %v80, inf
    %v95 = vsel %vm94, %v80, %v93
    %vm96 = vcmp.eq.f32.partialorder %v80, 0.0
    %v97 = vand.u32 %v80, 2147483648
    %v98 = vsel %vm96, %v97, %v95
    %v99 = vmul.f32 %v79, %v91
    %v100 = vmul.f32 %v80, %v98
    %v101 = vmul.f32 %v69, %v83
    %v102 = vmul.f32 %v70, %v84
    %v103 = vmul.f32 %v101, %v99
    %v104 = vmul.f32 %v102, %v100
    %v105 = vld [vmem:[#allocation7] sm:$0xff]
    %v106 = vadd.f32 %v103, %v104
    %v107 = vadd.f32 %v105, %v106
    %108 = vst [vmem:[#allocation7] sm:$0xff] %v107
    // Predicated region
    $region22: #{tpu_custom_call.1} parent=1 // pred_check
      _
    $region23: #{tpu_custom_call.1} parent=1 // pred_check_branch
      %110 = sbr.rel (0) target = $region25
    $region24: #{tpu_custom_call.1} parent=1 // pred_region
      %s112 = ssub.s32 128, 128
      %113 = vsyncadd [#allocation4], %s112
      %s115 = sshll.u32 [#allocation7], 4
      %s116 = int_to_ptr.vmem [resolvable:$true] %s115
      %118 = dma.vmem_to_hbm [thread:$0]  %s116, 128, %s2, [#allocation4]
    $region25: #{tpu_custom_call.1} parent=1 // pred_fallthru
      _
    // Predicated region
    $region26: #{tpu_custom_call.1} parent=1 // pred_check
      _
    $region27: #{tpu_custom_call.1} parent=1 // pred_check_branch
      %120 = sbr.rel (0) target = $region29
    $region28: #{tpu_custom_call.1} parent=1 // pred_region
      %121 = dma.done [#allocation4], 128
    $region29: #{tpu_custom_call.1} parent=1 // pred_fallthru
      _
    %122 = vsyncpa [#allocation3], 1
    %123 = vsyncpa [#allocation6], 1
    %124 = vsyncpa [#allocation4], 1

</llo_original>
